<compile_context>
chip_gen: v7x
topology: tpu7x:2x2x1
jax: 0.10.0
libtpu: 0.0.40
codegen_flags: <defaults>
</compile_context>

<pallas_src>
import functools

import jax
import jax.numpy as jnp
from jax.experimental import pallas as pl
from jax.experimental.pallas import tpu as pltpu

_LANE = 128
_MAX_BLOCK_ROWS = 2048          # 2048 x 128 f32 = 1 MiB per pipeline buffer
_TWO_PI = 6.283185307179586
_INV_2_24 = 1.0 / float(1 << 24)


def _i32(v: int):
    """Python int -> int32 constant with 32-bit wrap (so 0x8... constants work)."""
    v &= 0xFFFFFFFF
    if v >= (1 << 31):
        v -= 1 << 32
    return jnp.int32(v)


def _lsr(v, k: int):
    """Logical shift right on int32 (arithmetic shift + mask of the kept bits)."""
    return (v >> k) & _i32((1 << (32 - k)) - 1)


def _hash32(v):
    """lowbias32-style mixer: good avalanche on counter inputs; pure VPU int32 ops."""
    v = v ^ _lsr(v, 16)
    v = v * _i32(0x7FEB352D)
    v = v ^ _lsr(v, 15)
    v = v * _i32(0x846CA68B)
    v = v ^ _lsr(v, 16)
    return v


def _gaussian_noise_kernel(seed_ref, x_ref, o_ref, *, sigma, block_rows):
    shape = x_ref.shape                       # (block_rows, 128)

    # Global flat element index (invariant to the tiling) -> per-element counter.
    row = jax.lax.broadcasted_iota(jnp.int32, shape, 0)
    col = jax.lax.broadcasted_iota(jnp.int32, shape, 1)
    base = pl.program_id(0) * block_rows
    gidx = (base + row) * shape[1] + col

    # Two decorrelated 24-bit uniforms per element (seed mixed in, so different seeds
    # and different grid blocks give independent noise).
    h1 = _hash32(gidx ^ (seed_ref[0] * _i32(0x9E3779B9)))
    h2 = _hash32(h1 ^ _i32(0x85EBCA6B))
    u1 = 1.0 - _lsr(h1, 8).astype(jnp.float32) * _INV_2_24    # (0, 1]  (log-safe)
    u2 = _lsr(h2, 8).astype(jnp.float32) * _INV_2_24          # [0, 1)

    # Box-Muller -> exact N(0, 1) noise (log / sqrt / cos hit the EUP slot).
    r = jnp.sqrt(-2.0 * jnp.log(u1))
    noise = r * jnp.cos(_TWO_PI * u2)

    x = x_ref[...].astype(jnp.float32)
    o_ref[...] = (x * (1.0 + sigma * noise)).astype(o_ref.dtype)


def _round_up(v: int, m: int) -> int:
    return ((v + m - 1) // m) * m


def gaussian_noise(x, seed, sigma: float = 0.1, is_relative_detach: bool = True):
    """Forward pass of GaussianNoiseLayer: x + N(0,1) * sigma * x."""
    # is_relative_detach only affects gradients; forward value is identical.
    if sigma == 0.0:
        return x

    orig_shape = x.shape
    orig_dtype = x.dtype
    total = x.size
    itemsize = jnp.dtype(orig_dtype).itemsize

    # Sublane alignment depends on dtype packing (f32: 8, bf16: 16, int8/fp8: 32).
    packing = max(1, 4 // itemsize)
    row_align = 8 * packing

    rows = pl.cdiv(total, _LANE)
    block_rows = min(_MAX_BLOCK_ROWS, _round_up(rows, row_align))
    rows_pad = _round_up(rows, block_rows)
    padded_total = rows_pad * _LANE
    grid = (rows_pad // block_rows,)

    xf = jnp.ravel(x)
    if padded_total != total:
        # Only the tail needs padding; tile-aligned sizes skip this copy entirely.
        xf = jnp.pad(xf, (0, padded_total - total))
    x2 = xf.reshape(rows_pad, _LANE)

    seed_arr = jnp.asarray([seed], dtype=jnp.int32)

    kernel = functools.partial(
        _gaussian_noise_kernel, sigma=float(sigma), block_rows=block_rows)

    cost = pl.CostEstimate(
        flops=10 * padded_total,
        transcendentals=3 * padded_total,           # log + cos + sqrt per element
        bytes_accessed=2 * padded_total * itemsize,  # read x + write out, orig dtype
    )

    out2 = pl.pallas_call(
        kernel,
        out_shape=jax.ShapeDtypeStruct((rows_pad, _LANE), orig_dtype),
        grid_spec=pltpu.PrefetchScalarGridSpec(
            num_scalar_prefetch=1,   # seed lands in SMEM
            grid=grid,
            in_specs=[pl.BlockSpec((block_rows, _LANE), lambda i, seed: (i, 0))],
            out_specs=pl.BlockSpec((block_rows, _LANE), lambda i, seed: (i, 0)),
        ),
        compiler_params=pltpu.CompilerParams(
            dimension_semantics=("parallel",),       # elementwise -> megacore-shardable
        ),
        cost_estimate=cost,
        input_output_aliases={1: 0},  # output aliases x2 (input index 1, after the seed)
    )(seed_arr, x2)

    if padded_total != total:
        out = out2.reshape(-1)[:total].reshape(orig_shape)
    else:
        out = out2.reshape(orig_shape)
    return out


if __name__ == "__main__":
    key = jax.random.PRNGKey(0)
    # NCHW activations, matching the PyTorch Generator's conv feature maps.
    x = jax.random.normal(key, (2, 4, 16, 16), dtype=jnp.float32)

    sigma = 0.1
    out = jax.block_until_ready(gaussian_noise(x, seed=1234, sigma=sigma))

    assert out.shape == x.shape and out.dtype == x.dtype

    # Implied noise = (out - x) / (sigma * x) should be ~N(0, 1); mask tiny |x| so the
    # check stays numerically meaningful.
    mask = jnp.abs(x) > 1e-3
    n = jnp.sum(mask)
    implied = jnp.where(mask, (out - x) / (sigma * x), 0.0)
    m = float(jnp.sum(implied) / n)
    var = float(jnp.sum(jnp.where(mask, (implied - m) ** 2, 0.0)) / n)
    s = var ** 0.5
    assert abs(m) < 0.2 and abs(s - 1.0) < 0.2, (m, s)

    # Same seed -> identical noise (deterministic and tiling-invariant).
    out_again = jax.block_until_ready(gaussian_noise(x, seed=1234, sigma=sigma))
    assert bool(jnp.all(out_again == out))

    # sigma == 0 path: identity.
    out0 = gaussian_noise(x, seed=1234, sigma=0.0)
    assert bool(jnp.all(out0 == x))

    # Original-dtype passthrough (bf16 stays bf16 end-to-end, no wrapper casts).
    xb = x.astype(jnp.bfloat16)
    ob = jax.block_until_ready(gaussian_noise(xb, seed=7, sigma=sigma))
    assert ob.shape == xb.shape and ob.dtype == jnp.bfloat16

    print("KERNEL_OK")
</pallas_src>

<mosaic_0001>
module attributes {stable_mosaic.version = 11 : i64} {
  func.func @_gaussian_noise_kernel(%arg0: i32, %arg1: memref<1xi32, #tpu.memory_space<smem>>, %arg2: memref<16x128xf32, #tpu.memory_space<vmem>>, %arg3: memref<16x128xf32, #tpu.memory_space<vmem>>) attributes {dimension_semantics = [#tpu.dimension_semantics<parallel>], iteration_bounds = array<i64: 1>, scalar_prefetch = 1 : i64, scratch_operands = 0 : i64, tpu.core_type = #tpu.core_type<tc>, window_params = [{transform_indices = @transform_0, window_bounds = array<i64: 16, 128>}, {transform_indices = @transform_1, window_bounds = array<i64: 16, 128>}]} {
    %0 = tpu.iota {dimensions = array<i32: 0>} : vector<16x128xi32>
    %1 = tpu.iota {dimensions = array<i32: 1>} : vector<16x128xi32>
    %c16_i32 = arith.constant 16 : i32
    %2 = arith.muli %arg0, %c16_i32 : i32
    %3 = vector.broadcast %2 : i32 to vector<16x128xi32>
    %4 = arith.addi %3, %0 : vector<16x128xi32>
    %c128_i32 = arith.constant 128 : i32
    %5 = vector.broadcast %c128_i32 : i32 to vector<16x128xi32>
    %6 = arith.muli %4, %5 : vector<16x128xi32>
    %7 = arith.addi %6, %1 : vector<16x128xi32>
    %c0 = arith.constant 0 : index
    %8 = memref.load %arg1[%c0] : memref<1xi32, #tpu.memory_space<smem>>
    %c-1640531527_i32 = arith.constant -1640531527 : i32
    %9 = arith.muli %8, %c-1640531527_i32 : i32
    %10 = vector.broadcast %9 : i32 to vector<16x128xi32>
    %11 = arith.xori %7, %10 : vector<16x128xi32>
    %c16_i32_0 = arith.constant 16 : i32
    %12 = vector.broadcast %c16_i32_0 : i32 to vector<16x128xi32>
    %13 = arith.shrsi %11, %12 : vector<16x128xi32>
    %c65535_i32 = arith.constant 65535 : i32
    %14 = vector.broadcast %c65535_i32 : i32 to vector<16x128xi32>
    %15 = arith.andi %13, %14 : vector<16x128xi32>
    %16 = arith.xori %11, %15 : vector<16x128xi32>
    %c2146121005_i32 = arith.constant 2146121005 : i32
    %17 = vector.broadcast %c2146121005_i32 : i32 to vector<16x128xi32>
    %18 = arith.muli %16, %17 : vector<16x128xi32>
    %c15_i32 = arith.constant 15 : i32
    %19 = vector.broadcast %c15_i32 : i32 to vector<16x128xi32>
    %20 = arith.shrsi %18, %19 : vector<16x128xi32>
    %c131071_i32 = arith.constant 131071 : i32
    %21 = vector.broadcast %c131071_i32 : i32 to vector<16x128xi32>
    %22 = arith.andi %20, %21 : vector<16x128xi32>
    %23 = arith.xori %18, %22 : vector<16x128xi32>
    %c-2073254261_i32 = arith.constant -2073254261 : i32
    %24 = vector.broadcast %c-2073254261_i32 : i32 to vector<16x128xi32>
    %25 = arith.muli %23, %24 : vector<16x128xi32>
    %c16_i32_1 = arith.constant 16 : i32
    %26 = vector.broadcast %c16_i32_1 : i32 to vector<16x128xi32>
    %27 = arith.shrsi %25, %26 : vector<16x128xi32>
    %c65535_i32_2 = arith.constant 65535 : i32
    %28 = vector.broadcast %c65535_i32_2 : i32 to vector<16x128xi32>
    %29 = arith.andi %27, %28 : vector<16x128xi32>
    %30 = arith.xori %25, %29 : vector<16x128xi32>
    %c-2048144789_i32 = arith.constant -2048144789 : i32
    %31 = vector.broadcast %c-2048144789_i32 : i32 to vector<16x128xi32>
    %32 = arith.xori %30, %31 : vector<16x128xi32>
    %c16_i32_3 = arith.constant 16 : i32
    %33 = vector.broadcast %c16_i32_3 : i32 to vector<16x128xi32>
    %34 = arith.shrsi %32, %33 : vector<16x128xi32>
    %c65535_i32_4 = arith.constant 65535 : i32
    %35 = vector.broadcast %c65535_i32_4 : i32 to vector<16x128xi32>
    %36 = arith.andi %34, %35 : vector<16x128xi32>
    %37 = arith.xori %32, %36 : vector<16x128xi32>
    %c2146121005_i32_5 = arith.constant 2146121005 : i32
    %38 = vector.broadcast %c2146121005_i32_5 : i32 to vector<16x128xi32>
    %39 = arith.muli %37, %38 : vector<16x128xi32>
    %c15_i32_6 = arith.constant 15 : i32
    %40 = vector.broadcast %c15_i32_6 : i32 to vector<16x128xi32>
    %41 = arith.shrsi %39, %40 : vector<16x128xi32>
    %c131071_i32_7 = arith.constant 131071 : i32
    %42 = vector.broadcast %c131071_i32_7 : i32 to vector<16x128xi32>
    %43 = arith.andi %41, %42 : vector<16x128xi32>
    %44 = arith.xori %39, %43 : vector<16x128xi32>
    %c-2073254261_i32_8 = arith.constant -2073254261 : i32
    %45 = vector.broadcast %c-2073254261_i32_8 : i32 to vector<16x128xi32>
    %46 = arith.muli %44, %45 : vector<16x128xi32>
    %c16_i32_9 = arith.constant 16 : i32
    %47 = vector.broadcast %c16_i32_9 : i32 to vector<16x128xi32>
    %48 = arith.shrsi %46, %47 : vector<16x128xi32>
    %c65535_i32_10 = arith.constant 65535 : i32
    %49 = vector.broadcast %c65535_i32_10 : i32 to vector<16x128xi32>
    %50 = arith.andi %48, %49 : vector<16x128xi32>
    %51 = arith.xori %46, %50 : vector<16x128xi32>
    %c8_i32 = arith.constant 8 : i32
    %52 = vector.broadcast %c8_i32 : i32 to vector<16x128xi32>
    %53 = arith.shrsi %30, %52 : vector<16x128xi32>
    %c16777215_i32 = arith.constant 16777215 : i32
    %54 = vector.broadcast %c16777215_i32 : i32 to vector<16x128xi32>
    %55 = arith.andi %53, %54 : vector<16x128xi32>
    %56 = arith.sitofp %55 : vector<16x128xi32> to vector<16x128xf32>
    %cst = arith.constant 5.96046448E-8 : f32
    %57 = vector.broadcast %cst : f32 to vector<16x128xf32>
    %58 = arith.mulf %56, %57 : vector<16x128xf32>
    %cst_11 = arith.constant 1.000000e+00 : f32
    %59 = vector.broadcast %cst_11 : f32 to vector<16x128xf32>
    %60 = arith.subf %59, %58 : vector<16x128xf32>
    %c8_i32_12 = arith.constant 8 : i32
    %61 = vector.broadcast %c8_i32_12 : i32 to vector<16x128xi32>
    %62 = arith.shrsi %51, %61 : vector<16x128xi32>
    %c16777215_i32_13 = arith.constant 16777215 : i32
    %63 = vector.broadcast %c16777215_i32_13 : i32 to vector<16x128xi32>
    %64 = arith.andi %62, %63 : vector<16x128xi32>
    %65 = arith.sitofp %64 : vector<16x128xi32> to vector<16x128xf32>
    %cst_14 = arith.constant 5.96046448E-8 : f32
    %66 = vector.broadcast %cst_14 : f32 to vector<16x128xf32>
    %67 = arith.mulf %65, %66 : vector<16x128xf32>
    %68 = math.log %60 : vector<16x128xf32>
    %cst_15 = arith.constant -2.000000e+00 : f32
    %69 = vector.broadcast %cst_15 : f32 to vector<16x128xf32>
    %70 = arith.mulf %69, %68 : vector<16x128xf32>
    %71 = math.sqrt %70 : vector<16x128xf32>
    %cst_16 = arith.constant 6.28318548 : f32
    %72 = vector.broadcast %cst_16 : f32 to vector<16x128xf32>
    %73 = arith.mulf %72, %67 : vector<16x128xf32>
    %74 = math.cos %73 : vector<16x128xf32>
    %75 = arith.mulf %71, %74 : vector<16x128xf32>
    %c0_17 = arith.constant 0 : index
    %c0_18 = arith.constant 0 : index
    %76 = vector.load %arg2[%c0_17, %c0_18] : memref<16x128xf32, #tpu.memory_space<vmem>>, vector<16x128xf32>
    %cst_19 = arith.constant 1.000000e-01 : f32
    %77 = vector.broadcast %cst_19 : f32 to vector<16x128xf32>
    %78 = arith.mulf %77, %75 : vector<16x128xf32>
    %cst_20 = arith.constant 1.000000e+00 : f32
    %79 = vector.broadcast %cst_20 : f32 to vector<16x128xf32>
    %80 = arith.addf %79, %78 : vector<16x128xf32>
    %81 = arith.mulf %76, %80 : vector<16x128xf32>
    %c0_21 = arith.constant 0 : index
    %c0_22 = arith.constant 0 : index
    %82 = vector.load %arg3[%c0_21, %c0_22] : memref<16x128xf32, #tpu.memory_space<vmem>>, vector<16x128xf32>
    tpu.vector_store %arg3[%c0_21, %c0_22], %81 {strides = array<i32>} : memref<16x128xf32, #tpu.memory_space<vmem>>, vector<16x128xf32>,
    return
  }
  func.func @transform_0(%arg0: i32, %arg1: memref<1xi32, #tpu.memory_space<smem>>) -> (i32, i32) {
    %c0_i32 = arith.constant 0 : i32
    %c0_i32_0 = arith.constant 0 : i32
    return %arg0, %c0_i32 : i32, i32
  }
  func.func @transform_1(%arg0: i32, %arg1: memref<1xi32, #tpu.memory_space<smem>>) -> (i32, i32) {
    %c0_i32 = arith.constant 0 : i32
    %c0_i32_0 = arith.constant 0 : i32
    return %arg0, %c0_i32 : i32, i32
  }
}

</mosaic_0001>

<llo_original>
// kernel: tpu_custom_call.1
$region0: #{tpu_custom_call.1}
  #allocation0 [shape = 'u32[]', space=smem, size = 0x4, offset = 0x4, fixed_abs, tag = 'smem constant byte address 0x4 - core index']
  #allocation1 [shape = 'u32[144,128]{1,0:T(1,128)}', space=vmem, size = 0x12000, scoped, tag = 'internal scratch']
  #allocation2 [shape = 's32[1]{0}', space=sflag, size = 0x4, scoped, tag = 'scoped memory for tpu_custom_call.1']
  #allocation3 [shape = 's32[1]{0:T(128)S(6)}', space=smem, size = 0x200, scoped, tag = 'prefetched SMEM operand 0']
  %s0 = inlined_call_operand.<no memory space> [shape: s32[1], index: 0, kind: input, shape index: {}]
  %s1 = inlined_call_operand.hbm [shape: f32[16,128], index: 1, kind: input, shape index: {}, may-alias: {1,2}]
  %s2 = inlined_call_operand.hbm [shape: f32[16,128], index: 2, kind: output, shape index: {}, may-alias: {1,2}]
  %s3 = sld [smem:[#allocation0]]
  $region18: #{tpu_custom_call.1} parent=0
    _
  %s5 = ssub.s32 1, %s3
  %s6 = scalar_select 0, %s5, %s3
  %7 = sst [smem:[#allocation3]] %s0
  $region1: #{tpu_custom_call.1} parent=0
    #allocation4 [shape = 'u8[8192]{0}', space=vmem, size = 0x2000, scoped, tag = 'input window, operand 1, single buffered']
    #allocation5 [shape = 's32[1]{0}', space=sflag, size = 0x4, scoped, tag = 'scoped memory for tpu_custom_call.1']
    #allocation6 [shape = 's32[1]{0}', space=sflag, size = 0x4, scoped, tag = 'scoped memory for tpu_custom_call.1']
    #allocation7 [shape = 'u8[8192]{0}', space=vmem, size = 0x2000, scoped, tag = 'output window, operand 0, single buffered']
    %8 = vsyncpa [#allocation5], 0
    %9 = vsyncpa [#allocation6], 0
    // Predicated region
    $region2: #{tpu_custom_call.1} parent=1 // pred_check
      _
    $region3: #{tpu_custom_call.1} parent=1 // pred_check_branch
      %11 = sbr.rel (0) target = $region5
    $region4: #{tpu_custom_call.1} parent=1 // pred_region
      %s13 = ssub.s32 256, 256
      %14 = vsyncadd [#allocation5], %s13
      %s15 = sshll.u32 [#allocation4], 4
      %s16 = int_to_ptr.vmem [resolvable:$true] %s15
      %21 = dma.hbm_to_vmem [thread:$0]  %s1, 256, %s16, [#allocation5], 128, 128, 8
    $region5: #{tpu_custom_call.1} parent=1 // pred_fallthru
      _
    // Predicated region
    $region6: #{tpu_custom_call.1} parent=1 // pred_check
      _
    $region7: #{tpu_custom_call.1} parent=1 // pred_check_branch
      %23 = sbr.rel (0) target = $region9
    $region8: #{tpu_custom_call.1} parent=1 // pred_region
      %24 = dma.done [#allocation5], 256
    $region9: #{tpu_custom_call.1} parent=1 // pred_fallthru
      _
    %v25 = vlaneseq
    %v26 = vshrl.u32 %v25, 7
    %v27 = vadd.s32 %v26, 8
    %v28 = vlaneseq
    %v29 = vand.u32 %v28, 127
    %s30 = smul.u32 0, 16
    %v31 = vstv %s30
    %v32 = vadd.s32 %v31, %v26
    %v33 = vadd.s32 %v31, %v27
    %v34 = vmul.u32 %v32, 128
    %v35 = vmul.u32 %v33, 128
    %v36 = vadd.s32 %v34, %v29
    %v37 = vadd.s32 %v35, %v29
    %s38 = sld [smem:[#allocation3]]
    %s39 = smul.u32 %s38, 2654435769
    %v40 = vstv %s39
    %v41 = vxor.u32 %v36, %v40
    %v42 = vxor.u32 %v37, %v40
    %v43 = vshra.s32 %v41, 16
    %v44 = vshra.s32 %v42, 16
    %v45 = vand.u32 %v43, 65535
    %v46 = vand.u32 %v44, 65535
    %v47 = vxor.u32 %v41, %v45
    %v48 = vxor.u32 %v42, %v46
    %v49 = vmul.u32 %v47, 2146121005
    %v50 = vmul.u32 %v48, 2146121005
    %v51 = vshra.s32 %v49, 15
    %v52 = vshra.s32 %v50, 15
    %v53 = vand.u32 %v51, 131071
    %v54 = vand.u32 %v52, 131071
    %v55 = vxor.u32 %v49, %v53
    %v56 = vxor.u32 %v50, %v54
    %v57 = vmul.u32 %v55, 2221713035
    %v58 = vmul.u32 %v56, 2221713035
    %v59 = vshra.s32 %v57, 16
    %v60 = vshra.s32 %v58, 16
    %v61 = vand.u32 %v59, 65535
    %v62 = vand.u32 %v60, 65535
    %v63 = vxor.u32 %v57, %v61
    %v64 = vxor.u32 %v58, %v62
    %v65 = vxor.u32 %v63, 2246822507
    %v66 = vxor.u32 %v64, 2246822507
    %v67 = vshra.s32 %v65, 16
    %v68 = vshra.s32 %v66, 16
    %v69 = vand.u32 %v67, 65535
    %v70 = vand.u32 %v68, 65535
    %v71 = vxor.u32 %v65, %v69
    %v72 = vxor.u32 %v66, %v70
    %v73 = vmul.u32 %v71, 2146121005
    %v74 = vmul.u32 %v72, 2146121005
    %v75 = vshra.s32 %v73, 15
    %v76 = vshra.s32 %v74, 15
    %v77 = vand.u32 %v75, 131071
    %v78 = vand.u32 %v76, 131071
    %v79 = vxor.u32 %v73, %v77
    %v80 = vxor.u32 %v74, %v78
    %v81 = vmul.u32 %v79, 2221713035
    %v82 = vmul.u32 %v80, 2221713035
    %v83 = vshra.s32 %v81, 16
    %v84 = vshra.s32 %v82, 16
    %v85 = vand.u32 %v83, 65535
    %v86 = vand.u32 %v84, 65535
    %v87 = vxor.u32 %v81, %v85
    %v88 = vxor.u32 %v82, %v86
    %v89 = vshra.s32 %v63, 8
    %v90 = vshra.s32 %v64, 8
    %v91 = vand.u32 %v89, 16777215
    %v92 = vand.u32 %v90, 16777215
    %v93 = vcvt.s32.f32 %v91
    %v94 = vcvt.s32.f32 %v92
    %v95 = vmul.f32 %v93, 5.9604645e-08
    %v96 = vmul.f32 %v94, 5.9604645e-08
    %v97 = vsub.f32 1.0, %v95
    %v98 = vsub.f32 1.0, %v96
    %v99 = vshra.s32 %v87, 8
    %v100 = vshra.s32 %v88, 8
    %v101 = vand.u32 %v99, 16777215
    %v102 = vand.u32 %v100, 16777215
    %v103 = vcvt.s32.f32 %v101
    %v104 = vcvt.s32.f32 %v102
    %v105 = vmul.f32 %v103, 5.9604645e-08
    %v106 = vmul.f32 %v104, 5.9604645e-08
    %v107 = vlog2.pop %v97
    %v108 = vmul.f32 %v107, 0.6931472
    %v109 = vlog2.pop %v98
    %v110 = vmul.f32 %v109, 0.6931472
    %v111 = vmul.f32 %v108, -2.0
    %v112 = vmul.f32 %v110, -2.0
    %v113 = vrsqrt.pop %v111
    %v114 = vmul.f32 %v111, %v113
    %vm115 = vcmp.eq.f32.partialorder %v111, inf
    %v116 = vsel %vm115, %v111, %v114
    %vm117 = vcmp.eq.f32.partialorder %v111, 0.0
    %v118 = vand.u32 %v111, 2147483648
    %v119 = vsel %vm117, %v118, %v116
    %v120 = vrsqrt.pop %v112
    %v121 = vmul.f32 %v112, %v120
    %vm122 = vcmp.eq.f32.partialorder %v112, inf
    %v123 = vsel %vm122, %v112, %v121
    %vm124 = vcmp.eq.f32.partialorder %v112, 0.0
    %v125 = vand.u32 %v112, 2147483648
    %v126 = vsel %vm124, %v125, %v123
    %v127 = vmul.f32 %v105, 6.2831855
    %v128 = vmul.f32 %v106, 6.2831855
    %v129 = vand.u32 2147483647, %v127
    %vm130 = vcmp.le.f32.partialorder %v129, 0.7853982
    %vm131 = vcmp.lt.s32.totalorder %v127, 0
    %v132 = vand.u32 %v127, 2139095040
    %v133 = vshrl.u32 %v132, 23
    %v134 = vsub.s32 %v133, 127
    %v135 = vand.u32 2147483647, %v127
    %v136 = vand.u32 %v135, 8388607
    %v137 = vor.u32 %v136, 8388608
    %v138 = vsub.s32 0, %v137
    %v139 = vadd.s32 %v134, 1
    %vm140 = vcmp.gt.s32.totalorder %v139, 0
    %v141 = vsel %vm140, %v139, 0
    %v142 = vshrl.u32 %v141, 5
    %v143 = vand.u32 %v141, 31
    %v144 = vsub.s32 32, %v143
    %v145 = vshrl.u32 683565275, %v144
    %v146 = vshll.u32 683565275, %v143
    %v147 = vshrl.u32 2475754826, %v144
    %v148 = vor.u32 %v146, %v147
    %v149 = vshll.u32 2475754826, %v143
    %v150 = vshrl.u32 2131351028, %v144
    %v151 = vor.u32 %v149, %v150
    %v152 = vshll.u32 2131351028, %v143
    %v153 = vshrl.u32 2102212464, %v144
    %v154 = vor.u32 %v152, %v153
    %v155 = vshll.u32 2102212464, %v143
    %v156 = vshrl.u32 920167782, %v144
    %v157 = vor.u32 %v155, %v156
    %v158 = vshll.u32 920167782, %v143
    %v159 = vshrl.u32 1326507024, %v144
    %v160 = vor.u32 %v158, %v159
    %vm161 = vcmp.lt.s32.totalorder %v142, 1
    %vm162 = vcmp.lt.s32.totalorder %v142, 2
    %vm163 = vcmp.lt.s32.totalorder %v142, 3
    %vm164 = vcmp.lt.s32.totalorder %v142, 4
    %v165 = vsel %vm161, %v145, %v148
    %v166 = vsel %vm164, %v154, 2102212464
    %v167 = vsel %vm163, %v151, %v166
    %v168 = vsel %vm162, %v165, %v167
    %v169 = vsel %vm161, %v148, %v151
    %v170 = vsel %vm164, %v157, 920167782
    %v171 = vsel %vm163, %v154, %v170
    %v172 = vsel %vm162, %v169, %v171
    %v173 = vsel %vm161, %v151, %v154
    %v174 = vsel %vm164, %v160, 1326507024
    %v175 = vsel %vm163, %v157, %v174
    %v176 = vsel %vm162, %v173, %v175
    %v177 = vshll.u32 %v137, 8
    %v178 = vmul.u32.u64.compose %v177, %v176
    %v179 = vextract.low.u32 %v178
    %v180 = vextract.high.u32 %v178
    %v181 = vmul.u32.u64.compose %v177, %v172
    %v182 = vextract.low.u32 %v181
    %v183 = vextract.high.u32 %v181
    %v184 = vmul.u32 %v177, %v168
    %v185 = vadd.s32 %v180, %v182
    %vm186 = vc.u32 %v180, %v182
    %v187 = vadd.s32 %v183, 1
    %v188 = vsel %vm186, %v187, %v183
    %v189 = vadd.s32 %v184, %v188
    %v190 = vadd.s32 %v189, 536870912
    %v191 = vshrl.u32 %v190, 30
    %v192 = vshll.u32 %v191, 30
    %v193 = vsub.s32 %v189, %v192
    %vm194 = vcmp.lt.s32.totalorder %v193, 0
    %v195 = vsub.s32 0, %v193
    %v196 = vsel %vm194, %v195, %v193
    %v197 = vclz %v196
    %v198 = vsub.s32 %v197, 2
    %vm199 = vcmp.gt.s32.totalorder 0, %v198
    %v200 = vsel %vm199, 0, %v198
    %v201 = vsub.s32 32, %v200
    %v202 = vshll.u32 %v193, %v200
    %v203 = vshrl.u32 %v185, %v201
    %v204 = vor.u32 %v202, %v203
    %v205 = vsub.s32 4294967266, %v200
    %v206 = vadd.s32 %v205, 127
    %v207 = vshll.u32 %v206, 23
    %v208 = vor.u32 4788187, %v207
    %v209 = vand.u32 2147483647, %v208
    %v211 = vcvt.s32.f32 %v204
    %v212 = vmul.f32 %v211, %v209
    %v213 = vxor.u32 %v212, 2147483648
    %v214 = vsel %vm131, %v213, %v212
    %v215 = vsub.s32 4, %v191
    %v216 = vsel %vm131, %v215, %v191
    %v217 = vsel %vm130, %v127, %v214
    %v218 = vsel %vm130, 0, %v216
    %v219 = vcosq.f32.pop %v217
    %v220 = vsinq.f32.pop %v217
    %vm221 = vweird.f32 %v127
    %v222 = vand.u32 %v218, 3
    %vm223 = vcmp.lt.s32.totalorder %v222, 2
    %vm224 = vcmp.eq.s32.totalorder %v222, 0
    %v225 = vxor.u32 %v220, 2147483648
    %v226 = vsel %vm224, %v219, %v225
    %vm227 = vcmp.eq.s32.totalorder %v222, 2
    %v228 = vxor.u32 %v219, 2147483648
    %v229 = vsel %vm227, %v228, %v220
    %v230 = vsel %vm223, %v226, %v229
    %v231 = vsel %vm221, nan, %v230
    %v232 = vand.u32 2147483647, %v128
    %vm233 = vcmp.le.f32.partialorder %v232, 0.7853982
    %vm234 = vcmp.lt.s32.totalorder %v128, 0
    %v235 = vand.u32 %v128, 2139095040
    %v236 = vshrl.u32 %v235, 23
    %v237 = vsub.s32 %v236, 127
    %v238 = vand.u32 2147483647, %v128
    %v239 = vand.u32 %v238, 8388607
    %v240 = vor.u32 %v239, 8388608
    %v241 = vsub.s32 0, %v240
    %v242 = vadd.s32 %v237, 1
    %vm243 = vcmp.gt.s32.totalorder %v242, 0
    %v244 = vsel %vm243, %v242, 0
    %v245 = vshrl.u32 %v244, 5
    %v246 = vand.u32 %v244, 31
    %v247 = vsub.s32 32, %v246
    %v248 = vshrl.u32 683565275, %v247
    %v249 = vshll.u32 683565275, %v246
    %v250 = vshrl.u32 2475754826, %v247
    %v251 = vor.u32 %v249, %v250
    %v252 = vshll.u32 2475754826, %v246
    %v253 = vshrl.u32 2131351028, %v247
    %v254 = vor.u32 %v252, %v253
    %v255 = vshll.u32 2131351028, %v246
    %v256 = vshrl.u32 2102212464, %v247
    %v257 = vor.u32 %v255, %v256
    %v258 = vshll.u32 2102212464, %v246
    %v259 = vshrl.u32 920167782, %v247
    %v260 = vor.u32 %v258, %v259
    %v261 = vshll.u32 920167782, %v246
    %v262 = vshrl.u32 1326507024, %v247
    %v263 = vor.u32 %v261, %v262
    %vm264 = vcmp.lt.s32.totalorder %v245, 1
    %vm265 = vcmp.lt.s32.totalorder %v245, 2
    %vm266 = vcmp.lt.s32.totalorder %v245, 3
    %vm267 = vcmp.lt.s32.totalorder %v245, 4
    %v268 = vsel %vm264, %v248, %v251
    %v269 = vsel %vm267, %v257, 2102212464
    %v270 = vsel %vm266, %v254, %v269
    %v271 = vsel %vm265, %v268, %v270
    %v272 = vsel %vm264, %v251, %v254
    %v273 = vsel %vm267, %v260, 920167782
    %v274 = vsel %vm266, %v257, %v273
    %v275 = vsel %vm265, %v272, %v274
    %v276 = vsel %vm264, %v254, %v257
    %v277 = vsel %vm267, %v263, 1326507024
    %v278 = vsel %vm266, %v260, %v277
    %v279 = vsel %vm265, %v276, %v278
    %v280 = vshll.u32 %v240, 8
    %v281 = vmul.u32.u64.compose %v280, %v279
    %v282 = vextract.low.u32 %v281
    %v283 = vextract.high.u32 %v281
    %v284 = vmul.u32.u64.compose %v280, %v275
    %v285 = vextract.low.u32 %v284
    %v286 = vextract.high.u32 %v284
    %v287 = vmul.u32 %v280, %v271
    %v288 = vadd.s32 %v283, %v285
    %vm289 = vc.u32 %v283, %v285
    %v290 = vadd.s32 %v286, 1
    %v291 = vsel %vm289, %v290, %v286
    %v292 = vadd.s32 %v287, %v291
    %v293 = vadd.s32 %v292, 536870912
    %v294 = vshrl.u32 %v293, 30
    %v295 = vshll.u32 %v294, 30
    %v296 = vsub.s32 %v292, %v295
    %vm297 = vcmp.lt.s32.totalorder %v296, 0
    %v298 = vsub.s32 0, %v296
    %v299 = vsel %vm297, %v298, %v296
    %v300 = vclz %v299
    %v301 = vsub.s32 %v300, 2
    %vm302 = vcmp.gt.s32.totalorder 0, %v301
    %v303 = vsel %vm302, 0, %v301
    %v304 = vsub.s32 32, %v303
    %v305 = vshll.u32 %v296, %v303
    %v306 = vshrl.u32 %v288, %v304
    %v307 = vor.u32 %v305, %v306
    %v308 = vsub.s32 4294967266, %v303
    %v309 = vadd.s32 %v308, 127
    %v310 = vshll.u32 %v309, 23
    %v311 = vor.u32 4788187, %v310
    %v312 = vand.u32 2147483647, %v311
    %v314 = vcvt.s32.f32 %v307
    %v315 = vmul.f32 %v314, %v312
    %v316 = vxor.u32 %v315, 2147483648
    %v317 = vsel %vm234, %v316, %v315
    %v318 = vsub.s32 4, %v294
    %v319 = vsel %vm234, %v318, %v294
    %v320 = vsel %vm233, %v128, %v317
    %v321 = vsel %vm233, 0, %v319
    %v322 = vcosq.f32.pop %v320
    %v323 = vsinq.f32.pop %v320
    %vm324 = vweird.f32 %v128
    %v325 = vand.u32 %v321, 3
    %vm326 = vcmp.lt.s32.totalorder %v325, 2
    %vm327 = vcmp.eq.s32.totalorder %v325, 0
    %v328 = vxor.u32 %v323, 2147483648
    %v329 = vsel %vm327, %v322, %v328
    %vm330 = vcmp.eq.s32.totalorder %v325, 2
    %v331 = vxor.u32 %v322, 2147483648
    %v332 = vsel %vm330, %v331, %v323
    %v333 = vsel %vm326, %v329, %v332
    %v334 = vsel %vm324, nan, %v333
    %v335 = vmul.f32 %v119, %v231
    %v336 = vmul.f32 %v126, %v334
    %v337 = vld [vmem:[#allocation4] sm:$0xff]
    %v338 = vld [vmem:[#allocation4 + $0x8] sm:$0xff]
    %v339 = vmul.f32 %v335, 0.1
    %v340 = vmul.f32 %v336, 0.1
    %v341 = vadd.f32 %v339, 1.0
    %v342 = vadd.f32 %v340, 1.0
    %v343 = vmul.f32 %v337, %v341
    %v344 = vmul.f32 %v338, %v342
    %345 = vst [vmem:[#allocation7] sm:$0xff] %v343
    %346 = vst [vmem:[#allocation7 + $0x8] sm:$0xff] %v344
    // Predicated region
    $region10: #{tpu_custom_call.1} parent=1 // pred_check
      _
    $region11: #{tpu_custom_call.1} parent=1 // pred_check_branch
      %348 = sbr.rel (0) target = $region13
    $region12: #{tpu_custom_call.1} parent=1 // pred_region
      %s350 = ssub.s32 256, 256
      %351 = vsyncadd [#allocation6], %s350
      %s352 = sshll.u32 [#allocation7], 4
      %s353 = int_to_ptr.vmem [resolvable:$true] %s352
      %358 = dma.vmem_to_hbm [thread:$0]  %s353, 256, %s2, [#allocation6], 128, 128, 8
    $region13: #{tpu_custom_call.1} parent=1 // pred_fallthru
      _
    // Predicated region
    $region14: #{tpu_custom_call.1} parent=1 // pred_check
      _
    $region15: #{tpu_custom_call.1} parent=1 // pred_check_branch
      %360 = sbr.rel (0) target = $region17
    $region16: #{tpu_custom_call.1} parent=1 // pred_region
      %361 = dma.done [#allocation6], 256
    $region17: #{tpu_custom_call.1} parent=1 // pred_fallthru
      _
    %362 = vsyncpa [#allocation5], 1
    %363 = vsyncpa [#allocation6], 1

</llo_original>
